<compile_context>
chip_gen: v6e
topology: v6e:2x2x1
jax: 0.10.0
libtpu: 0.0.40
codegen_flags: <defaults>
</compile_context>

<pallas_src>
import math

import jax
import jax.numpy as jnp
from jax import lax
from jax.experimental import pallas as pl
from jax.experimental.pallas import tpu as pltpu


def _round_up(x, m):
    return ((x + m - 1) // m) * m


def _next_pow2(x):
    return 1 if x <= 1 else 1 << (x - 1).bit_length()


# ---------------------------------------------------------------------------
# Core: channel-last dilated conv, one fused Pallas kernel
# ---------------------------------------------------------------------------
def _dilated_conv_core(x_nlc, w_taps, bias, *, dilation, l_out, pad_left=0,
                       compute_dtype=jnp.bfloat16, out_dtype=None, tm=None):
    """With xp = zero-pad(x_nlc, pad_left rows on the left):

        y[n, t, co] = bias[co] + sum_{k,c} xp[n, t + k*dilation, c] * w_taps[k, c, co]

    for t in [0, l_out).  x_nlc: (N, L_in, C_in), w_taps: (K, C_in, C_out),
    bias: (C_out,) or None.  Returns (N, l_out, C_out) in out_dtype
    (default: x_nlc.dtype).  MXU runs in compute_dtype with f32 accumulation.
    """
    N, L_in, C_in = x_nlc.shape
    K, C_in_w, C_out = w_taps.shape
    assert C_in_w == C_in
    out_dtype = x_nlc.dtype if out_dtype is None else out_dtype
    cd_sz = jnp.dtype(compute_dtype).itemsize
    out_sz = jnp.dtype(out_dtype).itemsize
    halo = (K - 1) * dilation

    # --- output-channel tiling: lane-dense; whole weight resident when it fits.
    COUT_P = _round_up(C_out, 128)
    w_bytes_full = K * C_in * COUT_P * cd_sz
    if w_bytes_full <= (4 << 20) and COUT_P <= 512:
        TN = COUT_P                       # J == 1: weights DMA'd once, stay resident
    elif COUT_P % 256 == 0:
        TN = 256
    else:
        TN = 128
    J = COUT_P // TN

    # --- fold the K taps into one deep contraction when a single tap would
    #     underfeed the 256-deep MXU (WaveNet residual channels 64/128).
    fold = (K > 1) and (C_in % 8 == 0) and (C_in <= 128)

    # --- halo block: just enough rows past the tile to cover (K-1)*dilation,
    #     rounded to a power of two >= 16 so it tiles cleanly and divides TM.
    HP = 0 if K == 1 else max(16, _next_pow2(halo))

    def _vmem_need(tm_rows):
        x_b = 2 * tm_rows * C_in * cd_sz            # double-buffered input tile
        h_b = 2 * HP * C_in * cd_sz                 # double-buffered halo tile
        w_b = 2 * K * C_in * TN * cd_sz             # weight block
        b_b = 2 * TN * 4
        o_b = 2 * tm_rows * TN * out_sz             # double-buffered output tile
        acc_b = tm_rows * TN * 4                    # f32 matmul result
        stage = K * tm_rows * C_in * cd_sz          # tap staging values
        if fold:
            stage += tm_rows * K * C_in * cd_sz     # folded (TM, K*C_in) operand
        return x_b + h_b + w_b + b_b + o_b + acc_b + stage

    # --- row tile: biggest power-of-two tile that fits a conservative budget
    #     (keeps us safe on v7x's 64 MiB VMEM and v5e's 16 MiB scoped default).
    budget = 10 << 20
    if tm is not None:
        TM = _round_up(int(tm), 128)
    else:
        tm_cap = min(1024, max(128, _round_up(l_out, 128)))
        TM = 128
        for cand in (1024, 512, 256):
            if cand <= tm_cap and _vmem_need(cand) <= budget:
                TM = cand
                break
    TM = max(TM, HP)
    if HP:
        TM = _round_up(TM, HP)            # halo block index (i+1)*TM/HP must be exact
    T = -(-l_out // TM)
    ratio = (TM // HP) if HP else 0

    # --- single fused pad+cast HBM pass: causal left pad, tail pad, dtype cast.
    L_need = T * TM + HP
    pad_right = L_need - L_in - pad_left
    assert pad_right >= 0
    if pad_left or pad_right or x_nlc.dtype != compute_dtype:
        x_p = jnp.pad(x_nlc, ((0, 0), (pad_left, pad_right), (0, 0))
                      ).astype(compute_dtype)
    else:
        x_p = x_nlc

    w_p = w_taps
    if COUT_P != C_out:
        w_p = jnp.pad(w_p, ((0, 0), (0, 0), (0, COUT_P - C_out)))
    w_p = w_p.astype(compute_dtype)
    if fold:
        w_p = w_p.reshape(K * C_in, COUT_P)         # contraction-major weight
    b = jnp.zeros((C_out,), jnp.float32) if bias is None else bias.astype(jnp.float32)
    b_p = jnp.pad(b, (0, COUT_P - C_out)).reshape(1, COUT_P)

    def kernel(*refs):
        if K > 1:
            x_ref, h_ref, w_ref, b_ref, o_ref = refs
        else:
            x_ref, w_ref, b_ref, o_ref = refs

        # Taps are sliced directly from the compute-dtype refs — no f32 staging.
        taps = []
        for k in range(K):
            off = k * dilation
            if off == 0:
                taps.append(x_ref[0])
            elif off >= TM:                              # off == TM == HP (huge dilation)
                taps.append(h_ref[0, pl.ds(off - TM, TM), :])
            else:
                head = x_ref[0, pl.ds(off, TM - off), :]
                tail = h_ref[0, pl.ds(0, off), :]
                taps.append(jnp.concatenate([head, tail], axis=0))

        if fold:
            # One deep contraction: (TM, K*C_in) @ (K*C_in, TN), single acc pass.
            xk = jnp.concatenate(taps, axis=-1) if K > 1 else taps[0]
            acc = jnp.dot(xk, w_ref[...], preferred_element_type=jnp.float32)
        else:
            acc = jnp.dot(taps[0], w_ref[0], preferred_element_type=jnp.float32)
            for k in range(1, K):
                acc = acc + jnp.dot(taps[k], w_ref[k],
                                    preferred_element_type=jnp.float32)
        o_ref[0] = (acc + b_ref[...]).astype(o_ref.dtype)

    x_spec = pl.BlockSpec((1, TM, C_in), lambda n, i, j: (n, i, 0))
    if fold:
        w_spec = pl.BlockSpec((K * C_in, TN), lambda n, i, j: (0, j))
    else:
        w_spec = pl.BlockSpec((K, C_in, TN), lambda n, i, j: (0, 0, j))
    b_spec = pl.BlockSpec((1, TN), lambda n, i, j: (0, j))
    o_spec = pl.BlockSpec((1, TM, TN), lambda n, i, j: (n, i, j))
    if K > 1:
        h_spec = pl.BlockSpec((1, HP, C_in), lambda n, i, j: (n, (i + 1) * ratio, 0))
        in_specs = [x_spec, h_spec, w_spec, b_spec]
        args = (x_p, x_p, w_p, b_p)
    else:
        in_specs = [x_spec, w_spec, b_spec]
        args = (x_p, w_p, b_p)

    cost = pl.CostEstimate(
        flops=2 * N * T * TM * K * C_in * COUT_P,
        transcendentals=0,
        bytes_accessed=int(N * T * (TM + HP) * C_in * cd_sz
                           + K * C_in * COUT_P * cd_sz + COUT_P * 4
                           + N * T * TM * COUT_P * out_sz))

    out = pl.pallas_call(
        kernel,
        out_shape=jax.ShapeDtypeStruct((N, T * TM, COUT_P), out_dtype),
        grid_spec=pl.GridSpec(
            grid=(N, T, J),                # J == 1 for typical WaveNet layer sizes
            in_specs=in_specs,
            out_specs=o_spec),
        compiler_params=pltpu.CompilerParams(
            dimension_semantics=("parallel", "parallel", "arbitrary"),
            vmem_limit_bytes=int(min(56 << 20,
                                     max(32 << 20, 2 * _vmem_need(TM))))),
        cost_estimate=cost,
    )(*args)

    if T * TM != l_out:
        out = out[:, :l_out, :]
    if COUT_P != C_out:
        out = out[:, :, :C_out]
    return out


# ---------------------------------------------------------------------------
# WaveNet `Conv` forward
# ---------------------------------------------------------------------------
def conv1d_pallas_nlc(x_nlc, weight, bias, *, stride=1, dilation=1,
                      is_causal=False, compute_dtype=jnp.bfloat16,
                      out_dtype=None, tm=None):
    """Channel-last forward: (N, L, C_in) -> (N, L_out, C_out).

    Preferred entry point: keeping the WaveNet stack channel-last avoids the
    NCW<->NLC transposes of conv1d_pallas.  compute_dtype=bf16 runs the MXU in
    bf16 with f32 accumulation (pass jnp.float32 for exact-match numerics);
    out_dtype defaults to x's dtype (pass bf16 to halve output writeback).
    """
    N, L, C_in = x_nlc.shape
    C_out, C_in_w, K = weight.shape
    assert C_in_w == C_in
    assert dilation >= 1 and stride >= 1
    pad_left = (K - 1) * dilation if is_causal else 0
    L_eff = L + pad_left
    l_out = (L_eff - dilation * (K - 1) - 1) // stride + 1
    assert l_out > 0, "input too short for this kernel/dilation"

    w_taps = jnp.transpose(weight, (2, 1, 0))               # (K, C_in, C_out)

    if stride == 1:
        # Hot path: the causal pad is folded into the kernel's pad+cast pass.
        return _dilated_conv_core(x_nlc, w_taps, bias, dilation=dilation,
                                  l_out=l_out, pad_left=pad_left,
                                  compute_dtype=compute_dtype,
                                  out_dtype=out_dtype, tm=tm)

    # stride > 1 (cold path — WaveNet always uses stride=1): gather the K
    # strided taps in JAX and run the same kernel with taps folded into the
    # channel axis.
    # TODO(synk): fold the stride into the kernel's tap slicing to avoid this gather.
    if pad_left:
        x_nlc = jnp.pad(x_nlc, ((0, 0), (pad_left, 0), (0, 0)))
    taps = [lax.slice_in_dim(x_nlc, k * dilation,
                             k * dilation + (l_out - 1) * stride + 1,
                             axis=1)[:, ::stride, :] for k in range(K)]
    x_cols = jnp.concatenate(taps, axis=-1)                 # (N, l_out, K*C_in)
    w_cols = w_taps.reshape(1, K * C_in, C_out)
    return _dilated_conv_core(x_cols, w_cols, bias, dilation=1, l_out=l_out,
                              compute_dtype=compute_dtype, out_dtype=out_dtype,
                              tm=tm)


def conv1d_pallas(x, weight, bias, *, stride=1, dilation=1, is_causal=False,
                  compute_dtype=jnp.bfloat16, out_dtype=None, tm=None):
    """NCW wrapper matching the PyTorch module's layout."""
    # TODO(synk): keep the WaveNet stack channel-last between layers and call
    # conv1d_pallas_nlc directly to drop both transposes (extra HBM passes).
    y_nlc = conv1d_pallas_nlc(jnp.transpose(x, (0, 2, 1)), weight, bias,
                              stride=stride, dilation=dilation,
                              is_causal=is_causal, compute_dtype=compute_dtype,
                              out_dtype=out_dtype, tm=tm)
    return jnp.transpose(y_nlc, (0, 2, 1))


# ---------------------------------------------------------------------------
# Deterministic parameter init matching the PyTorch module's __init__
# ---------------------------------------------------------------------------
def init_conv_params(key, in_channels, out_channels, kernel_size,
                     init_gain="linear"):
    gain = 1.0                                # calculate_gain('linear') == 1.0
    fan_in = in_channels * kernel_size
    fan_out = out_channels * kernel_size
    bound_w = gain * math.sqrt(6.0 / (fan_in + fan_out))
    kw, kb = jax.random.split(key)
    weight = jax.random.uniform(
        kw, (out_channels, in_channels, kernel_size),
        minval=-bound_w, maxval=bound_w, dtype=jnp.float32)
    bound_b = 1.0 / math.sqrt(fan_in)
    bias = jax.random.uniform(
        kb, (out_channels,), minval=-bound_b, maxval=bound_b, dtype=jnp.float32)
    return weight, bias


# ---------------------------------------------------------------------------
# Pure-JAX reference (lax conv) for correctness checks
# ---------------------------------------------------------------------------
def conv1d_ref(x, weight, bias, *, stride=1, dilation=1, is_causal=False):
    K = weight.shape[2]
    if is_causal:
        x = jnp.pad(x, ((0, 0), (0, 0), ((K - 1) * dilation, 0)))
    y = lax.conv_general_dilated(
        x, weight, window_strides=(stride,), padding="VALID",
        rhs_dilation=(dilation,), dimension_numbers=("NCH", "OIH", "NCH"))
    return y + bias[None, :, None]


if __name__ == "__main__":
    key = jax.random.PRNGKey(0)
    k1, k2, k3, k4 = jax.random.split(key, 4)

    # 1) Tiny causal dilated conv (per-tap accumulation path, lane-ragged C_in).
    N, C_in, C_out, L = 2, 4, 8, 16
    ksz, dil = 3, 2
    x = jax.random.normal(k1, (N, C_in, L), dtype=jnp.float32)
    weight, bias = init_conv_params(k2, C_in, C_out, ksz)
    y = jax.block_until_ready(
        conv1d_pallas(x, weight, bias, stride=1, dilation=dil, is_causal=True))
    y_ref = conv1d_ref(x, weight, bias, stride=1, dilation=dil, is_causal=True)
    assert y.shape == (N, C_out, L), y.shape
    assert jnp.allclose(y, y_ref, atol=2e-2, rtol=2e-2), "causal mismatch vs reference"

    # 2) WaveNet-ish residual layer: folded-tap path, multi-row-tile halo
    #    indexing (tm=128 -> 3 row tiles) and the padded-C_out epilogue.
    N2, C2_in, C2_out, L2, ksz2, dil2 = 1, 64, 96, 300, 2, 8
    x2 = jax.random.normal(k3, (N2, C2_in, L2), dtype=jnp.float32)
    w2, b2 = init_conv_params(k4, C2_in, C2_out, ksz2)
    y2 = jax.block_until_ready(
        conv1d_pallas(x2, w2, b2, stride=1, dilation=dil2, is_causal=True, tm=128))
    y2_ref = conv1d_ref(x2, w2, b2, stride=1, dilation=dil2, is_causal=True)
    assert y2.shape == (N2, C2_out, L2), y2.shape
    assert jnp.allclose(y2, y2_ref, atol=3e-2, rtol=3e-2), "folded-tap mismatch vs reference"

    # 3) Non-causal strided config (exercises the stride>1 fallback path).
    y3 = jax.block_until_ready(
        conv1d_pallas(x, weight, bias, stride=2, dilation=1, is_causal=False))
    y3_ref = conv1d_ref(x, weight, bias, stride=2, dilation=1, is_causal=False)
    assert y3.shape == y3_ref.shape, (y3.shape, y3_ref.shape)
    assert jnp.allclose(y3, y3_ref, atol=2e-2, rtol=2e-2), "strided mismatch vs reference"

    print("KERNEL_OK")
</pallas_src>

<mosaic_0001>
module attributes {stable_mosaic.version = 11 : i64} {
  func.func @kernel(%arg0: i32, %arg1: i32, %arg2: i32, %arg3: memref<1x128x4xbf16, #tpu.memory_space<vmem>>, %arg4: memref<1x16x4xbf16, #tpu.memory_space<vmem>>, %arg5: memref<3x4x128xbf16, #tpu.memory_space<vmem>>, %arg6: memref<1x128xf32, #tpu.memory_space<vmem>>, %arg7: memref<1x128x128xf32, #tpu.memory_space<vmem>>) attributes {dimension_semantics = [#tpu.dimension_semantics<parallel>, #tpu.dimension_semantics<parallel>, #tpu.dimension_semantics<arbitrary>], iteration_bounds = array<i64: 2, 1, 1>, scalar_prefetch = 0 : i64, scratch_operands = 0 : i64, tpu.core_type = #tpu.core_type<tc>, window_params = [{transform_indices = @transform_0, window_bounds = array<i64: 1, 128, 4>}, {transform_indices = @transform_1, window_bounds = array<i64: 1, 16, 4>}, {transform_indices = @transform_2, window_bounds = array<i64: 3, 4, 128>}, {transform_indices = @transform_3, window_bounds = array<i64: 1, 128>}, {transform_indices = @transform_4, window_bounds = array<i64: 1, 128, 128>}]} {
    %c0 = arith.constant 0 : index
    %c0_0 = arith.constant 0 : index
    %c0_1 = arith.constant 0 : index
    %0 = vector.load %arg3[%c0, %c0_0, %c0_1] : memref<1x128x4xbf16, #tpu.memory_space<vmem>>, vector<1x128x4xbf16>
    %1 = vector.shape_cast %0 : vector<1x128x4xbf16> to vector<128x4xbf16>
    %c0_2 = arith.constant 0 : index
    %c2 = arith.constant 2 : index
    %c0_3 = arith.constant 0 : index
    %2 = vector.load %arg3[%c0_2, %c2, %c0_3] : memref<1x128x4xbf16, #tpu.memory_space<vmem>>, vector<1x126x4xbf16>
    %3 = vector.shape_cast %2 : vector<1x126x4xbf16> to vector<126x4xbf16>
    %c0_4 = arith.constant 0 : index
    %c0_5 = arith.constant 0 : index
    %c0_6 = arith.constant 0 : index
    %4 = vector.load %arg4[%c0_4, %c0_5, %c0_6] : memref<1x16x4xbf16, #tpu.memory_space<vmem>>, vector<1x2x4xbf16>
    %5 = vector.shape_cast %4 : vector<1x2x4xbf16> to vector<2x4xbf16>
    %6 = tpu.concatenate %3, %5 in 0 : vector<126x4xbf16>, vector<2x4xbf16> -> vector<128x4xbf16>
    %c0_7 = arith.constant 0 : index
    %c4 = arith.constant 4 : index
    %c0_8 = arith.constant 0 : index
    %7 = vector.load %arg3[%c0_7, %c4, %c0_8] : memref<1x128x4xbf16, #tpu.memory_space<vmem>>, vector<1x124x4xbf16>
    %8 = vector.shape_cast %7 : vector<1x124x4xbf16> to vector<124x4xbf16>
    %c0_9 = arith.constant 0 : index
    %c0_10 = arith.constant 0 : index
    %c0_11 = arith.constant 0 : index
    %9 = vector.load %arg4[%c0_9, %c0_10, %c0_11] : memref<1x16x4xbf16, #tpu.memory_space<vmem>>, vector<1x4x4xbf16>
    %10 = vector.shape_cast %9 : vector<1x4x4xbf16> to vector<4x4xbf16>
    %11 = tpu.concatenate %8, %10 in 0 : vector<124x4xbf16>, vector<4x4xbf16> -> vector<128x4xbf16>
    %c0_12 = arith.constant 0 : index
    %c0_13 = arith.constant 0 : index
    %c0_14 = arith.constant 0 : index
    %12 = vector.load %arg5[%c0_12, %c0_13, %c0_14] : memref<3x4x128xbf16, #tpu.memory_space<vmem>>, vector<1x4x128xbf16>
    %13 = vector.shape_cast %12 : vector<1x4x128xbf16> to vector<4x128xbf16>
    %cst = arith.constant dense<0.000000e+00> : vector<128x128xf32>
    %14 = tpu.matmul %1, %13, %cst {dimension_numbers = #tpu.dot_dimension_numbers<[1], [0], [0], [1], [0, 0, 1, 1], [], []>} : vector<128x4xbf16>, vector<4x128xbf16>, vector<128x128xf32> -> vector<128x128xf32>
    %c1 = arith.constant 1 : index
    %c0_15 = arith.constant 0 : index
    %c0_16 = arith.constant 0 : index
    %15 = vector.load %arg5[%c1, %c0_15, %c0_16] : memref<3x4x128xbf16, #tpu.memory_space<vmem>>, vector<1x4x128xbf16>
    %16 = vector.shape_cast %15 : vector<1x4x128xbf16> to vector<4x128xbf16>
    %cst_17 = arith.constant dense<0.000000e+00> : vector<128x128xf32>
    %17 = tpu.matmul %6, %16, %cst_17 {dimension_numbers = #tpu.dot_dimension_numbers<[1], [0], [0], [1], [0, 0, 1, 1], [], []>} : vector<128x4xbf16>, vector<4x128xbf16>, vector<128x128xf32> -> vector<128x128xf32>
    %18 = arith.addf %14, %17 : vector<128x128xf32>
    %c2_18 = arith.constant 2 : index
    %c0_19 = arith.constant 0 : index
    %c0_20 = arith.constant 0 : index
    %19 = vector.load %arg5[%c2_18, %c0_19, %c0_20] : memref<3x4x128xbf16, #tpu.memory_space<vmem>>, vector<1x4x128xbf16>
    %20 = vector.shape_cast %19 : vector<1x4x128xbf16> to vector<4x128xbf16>
    %cst_21 = arith.constant dense<0.000000e+00> : vector<128x128xf32>
    %21 = tpu.matmul %11, %20, %cst_21 {dimension_numbers = #tpu.dot_dimension_numbers<[1], [0], [0], [1], [0, 0, 1, 1], [], []>} : vector<128x4xbf16>, vector<4x128xbf16>, vector<128x128xf32> -> vector<128x128xf32>
    %22 = arith.addf %18, %21 : vector<128x128xf32>
    %c0_22 = arith.constant 0 : index
    %c0_23 = arith.constant 0 : index
    %23 = vector.load %arg6[%c0_22, %c0_23] : memref<1x128xf32, #tpu.memory_space<vmem>>, vector<1x128xf32>
    %24 = vector.broadcast %23 : vector<1x128xf32> to vector<128x128xf32>
    %25 = arith.addf %22, %24 : vector<128x128xf32>
    %c0_24 = arith.constant 0 : index
    %c0_25 = arith.constant 0 : index
    %c0_26 = arith.constant 0 : index
    %26 = vector.load %arg7[%c0_24, %c0_25, %c0_26] : memref<1x128x128xf32, #tpu.memory_space<vmem>>, vector<1x128x128xf32>
    %27 = vector.shape_cast %26 : vector<1x128x128xf32> to vector<128x128xf32>
    %28 = vector.shape_cast %25 : vector<128x128xf32> to vector<1x128x128xf32>
    tpu.vector_store %arg7[%c0_24, %c0_25, %c0_26], %28 {strides = array<i32>} : memref<1x128x128xf32, #tpu.memory_space<vmem>>, vector<1x128x128xf32>,
    return
  }
  func.func @transform_0(%arg0: i32, %arg1: i32, %arg2: i32) -> (i32, i32, i32) {
    %c0_i32 = arith.constant 0 : i32
    %c0_i32_0 = arith.constant 0 : i32
    return %arg0, %arg1, %c0_i32 : i32, i32, i32
  }
  func.func @transform_1(%arg0: i32, %arg1: i32, %arg2: i32) -> (i32, i32, i32) {
    %c1_i32 = arith.constant 1 : i32
    %0 = arith.addi %arg1, %c1_i32 : i32
    %c8_i32 = arith.constant 8 : i32
    %1 = arith.muli %0, %c8_i32 : i32
    %c0_i32 = arith.constant 0 : i32
    %c0_i32_0 = arith.constant 0 : i32
    return %arg0, %1, %c0_i32 : i32, i32, i32
  }
  func.func @transform_2(%arg0: i32, %arg1: i32, %arg2: i32) -> (i32, i32, i32) {
    %c0_i32 = arith.constant 0 : i32
    %c0_i32_0 = arith.constant 0 : i32
    %c0_i32_1 = arith.constant 0 : i32
    return %c0_i32, %c0_i32_0, %arg2 : i32, i32, i32
  }
  func.func @transform_3(%arg0: i32, %arg1: i32, %arg2: i32) -> (i32, i32) {
    %c0_i32 = arith.constant 0 : i32
    %c0_i32_0 = arith.constant 0 : i32
    return %c0_i32, %arg2 : i32, i32
  }
  func.func @transform_4(%arg0: i32, %arg1: i32, %arg2: i32) -> (i32, i32, i32) {
    %c0_i32 = arith.constant 0 : i32
    return %arg0, %arg1, %arg2 : i32, i32, i32
  }
}

</mosaic_0001>

<llo_original>
// kernel: tpu_custom_call.1
$region0: #{tpu_custom_call.1}
  #allocation0 [shape = 'u32[]', space=smem, size = 0x4, offset = 0x4, fixed_abs, tag = 'smem constant byte address 0x4 - core index']
  #allocation1 [shape = 'u32[144,128]{1,0:T(1,128)}', space=vmem, size = 0x12000, scoped, tag = 'internal scratch']
  %s0 = inlined_call_operand.vmem [shape: bf16[2,144,4], index: 0, kind: input, shape index: {}]
  %s1 = inlined_call_operand.vmem [shape: bf16[2,144,4], index: 1, kind: input, shape index: {}]
  %s2 = inlined_call_operand.vmem [shape: bf16[3,4,128], index: 2, kind: input, shape index: {}]
  %s3 = inlined_call_operand.vmem [shape: f32[1,128], index: 3, kind: input, shape index: {}]
  %s4 = inlined_call_operand.hbm [shape: f32[2,128,128], index: 4, kind: output, shape index: {}]
  %s5 = sld [smem:[#allocation0]]
  $region49: #{tpu_custom_call.1} parent=0
    _
  %s7 = ssub.s32 1, %s5
  %s8 = scalar_select 0, %s7, %s5
  $region1: #{tpu_custom_call.1} parent=0
    #allocation2 [shape = 'u8[131072]{0}', space=vmem, size = 0x20000, scoped, tag = 'output window, operand 0']
    #allocation3 [shape = 's32[2]{0}', space=sflag, size = 0x8, scoped, tag = 'scoped memory for tpu_custom_call.1']
    %9 = vsyncpa [#allocation3], 0
    %s10 = scalar_lea.sflag [#allocation3], 1
    %11 = vsyncpa %s10, 0
    loop: start=0, step=1, limit=4
    $region2: #{tpu_custom_call.1} parent=1 // loop_pre_header
      _
    $region3: #{tpu_custom_call.1} parent=1 // loop_header
      %s13 = sphi 0, %s17
      %p14 = scmp.ge.s32.totalorder %s13, 4
      %s20 = sphi 0, %s39
      %s21 = sphi 0, %s35
      %s22 = sphi 0, %s31
      %s23 = sphi 0, %s20
      %s24 = sphi 0, %s21
      %s25 = sphi 0, %s22
      %s26 = sphi 0, %s23
      %s27 = sphi 0, %s24
      %s28 = sphi 0, %s25
      %s44 = sphi 0, %s46
      %s47 = sphi 0, %s44
      %s48 = sphi 0, %s47
      %s64 = sphi 0, %s48
      %s76 = sphi 0, %s78
      %s79 = sphi 0, %s76
      %s80 = sphi 0, %s79
      %s96 = sphi 0, %s80
      %s102 = sphi 0, %s104
      %s105 = sphi 0, %s102
      %s106 = sphi 0, %s105
      %s122 = sphi 0, %s106
      %s128 = sphi 0, %s130
      %s131 = sphi 0, %s128
      %s132 = sphi 0, %s131
      %s148 = sphi 0, %s132
      %s158 = sphi 0, %s160
      %s161 = sphi 0, %s158
      %s162 = sphi 0, %s161
      %s178 = sphi 0, %s162
    $region4: #{tpu_custom_call.1} parent=1 // loop_header_branch
      %16 = sbr.rel (%p14) target = $region8
    $region5: #{tpu_custom_call.1} parent=1 // loop_body
      %s18 = ssub.s32 %s13, 1
      %s19 = ssub.s32 %s13, 2
      %s29 = sadd.s32 1, %s22
      %p30 = scmp.ge.s32.totalorder %s29, 1
      %s31 = scalar_select %p30, 0, %s29
      %s32 = sadd.s32 1, %s21
      %s33 = scalar_select %p30, %s32, %s21
      %p34 = scmp.ge.s32.totalorder %s33, 1
      %s35 = scalar_select %p34, 0, %s33
      %s36 = sadd.s32 1, %s20
      %s37 = scalar_select %p34, %s36, %s20
      %p38 = scmp.ge.s32.totalorder %s37, 2
      %s39 = scalar_select %p38, 0, %s37
      %s40 = ssub.s32 %s20, %s39
      %s41 = ssub.s32 %s21, %s35
      %s42 = sor.u32 %s40, %s41
      %p43 = scmp.eq.s32.totalorder %s42, 0
      %s45 = sadd.s32 %s44, 1
      %s46 = scalar_select %p43, %s44, %s45
      %p49 = pneg %p43
      %p50 = scmp.eq.s32.totalorder %s13, 1
      %p51 = por %p49, %p50
      %p52 = scmp.ne.s32.totalorder %s44, %s47
      %p53 = scmp.eq.s32.totalorder %s13, 0
      %p54 = por %p52, %p53
      %p55 = scmp.ne.s32.totalorder %s44, %s47
      %p56 = scmp.eq.s32.totalorder %s18, 1
      %p57 = por %p55, %p56
      %p58 = scmp.ne.s32.totalorder %s47, %s48
      %p59 = scmp.eq.s32.totalorder %s18, 0
      %p60 = por %p58, %p59
      %p61 = scmp.ne.s32.totalorder %s47, %s48
      %p62 = scmp.eq.s32.totalorder %s19, 1
      %p63 = por %p61, %p62
      %p65 = scmp.ne.s32.totalorder %s48, %s64
      %p66 = scmp.eq.s32.totalorder %s19, 0
      %p67 = por %p65, %p66
      %s68 = sadd.s32 %s21, 1
      %s69 = smul.u32 %s68, 8
      %s70 = sadd.s32 %s35, 1
      %s71 = smul.u32 %s70, 8
      %s72 = ssub.s32 %s20, %s39
      %s73 = ssub.s32 %s69, %s71
      %s74 = sor.u32 %s72, %s73
      %p75 = scmp.eq.s32.totalorder %s74, 0
      %s77 = sadd.s32 %s76, 1
      %s78 = scalar_select %p75, %s76, %s77
      %p81 = pneg %p75
      %p82 = scmp.eq.s32.totalorder %s13, 1
      %p83 = por %p81, %p82
      %p84 = scmp.ne.s32.totalorder %s76, %s79
      %p85 = scmp.eq.s32.totalorder %s13, 0
      %p86 = por %p84, %p85
      %p87 = scmp.ne.s32.totalorder %s76, %s79
      %p88 = scmp.eq.s32.totalorder %s18, 1
      %p89 = por %p87, %p88
      %p90 = scmp.ne.s32.totalorder %s79, %s80
      %p91 = scmp.eq.s32.totalorder %s18, 0
      %p92 = por %p90, %p91
      %p93 = scmp.ne.s32.totalorder %s79, %s80
      %p94 = scmp.eq.s32.totalorder %s19, 1
      %p95 = por %p93, %p94
      %p97 = scmp.ne.s32.totalorder %s80, %s96
      %p98 = scmp.eq.s32.totalorder %s19, 0
      %p99 = por %p97, %p98
      %s100 = ssub.s32 %s22, %s31
      %p101 = scmp.eq.s32.totalorder %s100, 0
      %s103 = sadd.s32 %s102, 1
      %s104 = scalar_select %p101, %s102, %s103
      %p107 = pneg %p101
      %p108 = scmp.eq.s32.totalorder %s13, 1
      %p109 = por %p107, %p108
      %p110 = scmp.ne.s32.totalorder %s102, %s105
      %p111 = scmp.eq.s32.totalorder %s13, 0
      %p112 = por %p110, %p111
      %p113 = scmp.ne.s32.totalorder %s102, %s105
      %p114 = scmp.eq.s32.totalorder %s18, 1
      %p115 = por %p113, %p114
      %p116 = scmp.ne.s32.totalorder %s105, %s106
      %p117 = scmp.eq.s32.totalorder %s18, 0
      %p118 = por %p116, %p117
      %p119 = scmp.ne.s32.totalorder %s105, %s106
      %p120 = scmp.eq.s32.totalorder %s19, 1
      %p121 = por %p119, %p120
      %p123 = scmp.ne.s32.totalorder %s106, %s122
      %p124 = scmp.eq.s32.totalorder %s19, 0
      %p125 = por %p123, %p124
      %s126 = ssub.s32 %s22, %s31
      %p127 = scmp.eq.s32.totalorder %s126, 0
      %s129 = sadd.s32 %s128, 1
      %s130 = scalar_select %p127, %s128, %s129
      %p133 = pneg %p127
      %p134 = scmp.eq.s32.totalorder %s13, 1
      %p135 = por %p133, %p134
      %p136 = scmp.ne.s32.totalorder %s128, %s131
      %p137 = scmp.eq.s32.totalorder %s13, 0
      %p138 = por %p136, %p137
      %p139 = scmp.ne.s32.totalorder %s128, %s131
      %p140 = scmp.eq.s32.totalorder %s18, 1
      %p141 = por %p139, %p140
      %p142 = scmp.ne.s32.totalorder %s131, %s132
      %p143 = scmp.eq.s32.totalorder %s18, 0
      %p144 = por %p142, %p143
      %p145 = scmp.ne.s32.totalorder %s131, %s132
      %p146 = scmp.eq.s32.totalorder %s19, 1
      %p147 = por %p145, %p146
      %p149 = scmp.ne.s32.totalorder %s132, %s148
      %p150 = scmp.eq.s32.totalorder %s19, 0
      %p151 = por %p149, %p150
      %s152 = ssub.s32 %s20, %s39
      %s153 = ssub.s32 %s21, %s35
      %s154 = sor.u32 %s152, %s153
      %s155 = ssub.s32 %s22, %s31
      %s156 = sor.u32 %s154, %s155
      %p157 = scmp.eq.s32.totalorder %s156, 0
      %s159 = sadd.s32 %s158, 1
      %s160 = scalar_select %p157, %s158, %s159
      %p163 = pneg %p157
      %p164 = scmp.eq.s32.totalorder %s13, 1
      %p165 = por %p163, %p164
      %p166 = scmp.ne.s32.totalorder %s158, %s161
      %p167 = scmp.eq.s32.totalorder %s13, 0
      %p168 = por %p166, %p167
      %p169 = scmp.ne.s32.totalorder %s158, %s161
      %p170 = scmp.eq.s32.totalorder %s18, 1
      %p171 = por %p169, %p170
      %p172 = scmp.ne.s32.totalorder %s161, %s162
      %p173 = scmp.eq.s32.totalorder %s18, 0
      %p174 = por %p172, %p173
      %p175 = scmp.ne.s32.totalorder %s161, %s162
      %p176 = scmp.eq.s32.totalorder %s19, 1
      %p177 = por %p175, %p176
      %p179 = scmp.ne.s32.totalorder %s162, %s178
      %p180 = scmp.eq.s32.totalorder %s19, 0
      %p181 = por %p179, %p180
      %p182 = scmp.le.s32.totalorder 1, %s13
      %p183 = scmp.lt.s32.totalorder %s13, 3
      %p184 = pnand %p182, %p183
      %p185 = pneg %p184
      // Predicated region
      $region9: #{tpu_custom_call.1} parent=5 // pred_check
        _
      $region10: #{tpu_custom_call.1} parent=5 // pred_check_branch
        %187 = sbr.rel (%p184) target = $region12
      $region11: #{tpu_custom_call.1} parent=5 // pred_region
        %s188 = ssub.s32 %s13, 1
        // Predicated region
        $region13: #{tpu_custom_call.1} parent=11 // pred_check
          %p189 = pneg %p118
        $region14: #{tpu_custom_call.1} parent=11 // pred_check_branch
          %191 = sbr.rel (%p189) target = $region16
        $region15: #{tpu_custom_call.1} parent=11 // pred_region
          %p192 = scmp.lt.s32.totalorder %s25, 0
          %s193 = scalar_select %p192, %s25, 0
          %s194 = smul.addr %s193, 2
          %s195 = scalar_lea.vmem %s2, %s194
        $region16: #{tpu_custom_call.1} parent=11 // pred_fallthru
          _
        // Predicated region
        $region17: #{tpu_custom_call.1} parent=11 // pred_check
          %p196 = pneg %p144
        $region18: #{tpu_custom_call.1} parent=11 // pred_check_branch
          %198 = sbr.rel (%p196) target = $region20
        $region19: #{tpu_custom_call.1} parent=11 // pred_region
          %p199 = scmp.lt.s32.totalorder %s25, 0
          %s200 = scalar_select %p199, %s25, 0
          %s201 = scalar_lea.vmem %s3, %s200
        $region20: #{tpu_custom_call.1} parent=11 // pred_fallthru
          _
      $region12: #{tpu_custom_call.1} parent=5 // pred_fallthru
        _
      %p202 = scmp.lt.s32.totalorder %s13, 2
      // Predicated region
      $region21: #{tpu_custom_call.1} parent=5 // pred_check
        %p203 = pneg %p202
      $region22: #{tpu_custom_call.1} parent=5 // pred_check_branch
        %205 = sbr.rel (%p203) target = $region24
      $region23: #{tpu_custom_call.1} parent=5 // pred_region
        // Predicated region
        $region25: #{tpu_custom_call.1} parent=23 // pred_check
          %p206 = pneg %p54
        $region26: #{tpu_custom_call.1} parent=23 // pred_check_branch
          %208 = sbr.rel (%p206) target = $region28
        $region27: #{tpu_custom_call.1} parent=23 // pred_region
          %s209 = smul.u32 16, %s21
          %s210 = ssub.s32 18, %s209
          %p211 = scmp.lt.s32.totalorder %s210, 16
          %s212 = scalar_select %p211, %s210, 16
          %s213 = smul.u32 64, %s212
          %p214 = scmp.lt.s32.totalorder %s20, 1
          %s215 = scalar_select %p214, %s20, 1
          %p216 = scmp.lt.s32.totalorder %s209, 17
          %s217 = scalar_select %p216, %s209, 17
          %s218 = smul.addr %s215, 18
          %s219 = sadd.s32 %s217, %s218
          %s220 = smul.addr %s219, 4
          %s221 = scalar_lea.vmem %s0, %s220
          %s222 = smul.u32 16, %s21
          %s223 = ssub.s32 18, %s222
          %p224 = scmp.lt.s32.totalorder %s223, 16
          %s225 = scalar_select %p224, %s223, 16
          %s226 = smul.u32 64, %s225
        $region28: #{tpu_custom_call.1} parent=23 // pred_fallthru
          _
        // Predicated region
        $region29: #{tpu_custom_call.1} parent=23 // pred_check
          %p227 = pneg %p86
        $region30: #{tpu_custom_call.1} parent=23 // pred_check_branch
          %229 = sbr.rel (%p227) target = $region32
        $region31: #{tpu_custom_call.1} parent=23 // pred_region
          %s230 = sadd.s32 %s21, 1
          %s231 = smul.u32 %s230, 8
          %s232 = smul.u32 2, %s231
          %p233 = scmp.lt.s32.totalorder %s20, 1
          %s234 = scalar_select %p233, %s20, 1
          %p235 = scmp.lt.s32.totalorder %s232, 17
          %s236 = scalar_select %p235, %s232, 17
          %s237 = smul.addr %s234, 18
          %s238 = sadd.s32 %s236, %s237
          %s239 = smul.addr %s238, 4
          %s240 = scalar_lea.vmem %s1, %s239
          %s241 = sadd.s32 %s21, 1
          %s242 = smul.u32 %s241, 8
          %s243 = smul.u32 2, %s242
        $region32: #{tpu_custom_call.1} parent=23 // pred_fallthru
          _
      $region24: #{tpu_custom_call.1} parent=5 // pred_fallthru
        _
      %p244 = scmp.le.s32.totalorder 1, %s13
      %p245 = scmp.lt.s32.totalorder %s13, 3
      %p246 = pnand %p244, %p245
      %p247 = pneg %p246
      // Predicated region
      $region33: #{tpu_custom_call.1} parent=5 // pred_check
        _
      $region34: #{tpu_custom_call.1} parent=5 // pred_check_branch
        %249 = sbr.rel (%p246) target = $region36
      $region35: #{tpu_custom_call.1} parent=5 // pred_region
        %s250 = ssub.s32 %s13, 1
        %s251 = smul.u32 16, %s24
        %s252 = ssub.s32 18, %s251
        %p253 = scmp.lt.s32.totalorder %s252, 16
        %s254 = scalar_select %p253, %s252, 16
        %s255 = smul.u32 64, %s254
        %p256 = scmp.lt.s32.totalorder %s23, 1
        %s257 = scalar_select %p256, %s23, 1
        %p258 = scmp.lt.s32.totalorder %s251, 17
        %s259 = scalar_select %p258, %s251, 17
        %s260 = smul.addr %s257, 18
        %s261 = sadd.s32 %s259, %s260
        %s262 = smul.addr %s261, 4
        %s263 = scalar_lea.vmem %s0, %s262
        %p264 = pneg %p60
        %p265 = pneg %p57
        %s266 = sadd.s32 %s24, 1
        %s267 = smul.u32 %s266, 8
        %s268 = smul.u32 2, %s267
        %p269 = scmp.lt.s32.totalorder %s23, 1
        %s270 = scalar_select %p269, %s23, 1
        %p271 = scmp.lt.s32.totalorder %s268, 17
        %s272 = scalar_select %p271, %s268, 17
        %s273 = smul.addr %s270, 18
        %s274 = sadd.s32 %s272, %s273
        %s275 = smul.addr %s274, 4
        %s276 = scalar_lea.vmem %s1, %s275
        %p277 = pneg %p92
        %p278 = pneg %p89
        %p279 = scmp.lt.s32.totalorder %s25, 0
        %s280 = scalar_select %p279, %s25, 0
        %s281 = smul.addr %s280, 2
        %s282 = scalar_lea.vmem %s2, %s281
        %p283 = pneg %p118
        %p284 = pneg %p115
        %p285 = scmp.lt.s32.totalorder %s25, 0
        %s286 = scalar_select %p285, %s25, 0
        %s287 = scalar_lea.vmem %s3, %s286
        %p288 = pneg %p144
        %p289 = pneg %p141
        %p290 = pneg %p174
        %p291 = pneg %p171
        %s292 = sand.u32 %s161, 1
        %s293 = scalar_lea.sflag [#allocation3], %s292
        %s294 = sand.u32 %s161, 1
        %s295 = smul.addr %s294, 128
        %s296 = scalar_lea.vmem [#allocation2], %s295
        %s297 = smul.u32 16, %s24
        %s298 = ssub.s32 18, %s297
        %p299 = scmp.lt.s32.totalorder %s298, 16
        %s300 = scalar_select %p299, %s298, 16
        %s301 = smul.u32 64, %s300
        %p302 = scmp.lt.s32.totalorder %s23, 1
        %s303 = scalar_select %p302, %s23, 1
        %p304 = scmp.lt.s32.totalorder %s297, 17
        %s305 = scalar_select %p304, %s297, 17
        %s306 = smul.addr %s303, 18
        %s307 = sadd.s32 %s305, %s306
        %s308 = smul.addr %s307, 4
        %s309 = scalar_lea.vmem %s0, %s308
        %s310 = smul.u32 16, %s24
        %s311 = ssub.s32 18, %s310
        %p312 = scmp.lt.s32.totalorder %s311, 16
        %s313 = scalar_select %p312, %s311, 16
        %s314 = smul.u32 64, %s313
        %s315 = sadd.s32 %s24, 1
        %s316 = smul.u32 %s315, 8
        %s317 = smul.u32 2, %s316
        %p318 = scmp.lt.s32.totalorder %s23, 1
        %s319 = scalar_select %p318, %s23, 1
        %p320 = scmp.lt.s32.totalorder %s317, 17
        %s321 = scalar_select %p320, %s317, 17
        %s322 = smul.addr %s319, 18
        %s323 = sadd.s32 %s321, %s322
        %s324 = smul.addr %s323, 4
        %s325 = scalar_lea.vmem %s1, %s324
        %s326 = sadd.s32 %s24, 1
        %s327 = smul.u32 %s326, 8
        %s328 = smul.u32 2, %s327
        %p329 = scmp.lt.s32.totalorder %s25, 0
        %s330 = scalar_select %p329, %s25, 0
        %s331 = smul.addr %s330, 2
        %s332 = scalar_lea.vmem %s2, %s331
        %p333 = scmp.lt.s32.totalorder %s25, 0
        %s334 = scalar_select %p333, %s25, 0
        %s335 = scalar_lea.vmem %s3, %s334
        %s336 = smul.u32 16, %s24
        %v338 = vld [vmem:[%s309] sm:$0xf]
        %v339 = vld [vmem:[%s309 + $0x4] sm:$0xf]
        %v340 = vld [vmem:[%s309 + $0x8] sm:$0xf]
        %v341 = vld [vmem:[%s309 + $0xc] sm:$0xf]
        %v342 = vld [vmem:[%s309 + $0x10] sm:$0xf]
        %v343 = vld [vmem:[%s309 + $0x14] sm:$0xf]
        %v344 = vld [vmem:[%s309 + $0x18] sm:$0xf]
        %v345 = vld [vmem:[%s309 + $0x1c] sm:$0xf]
        %v346 = vld [vmem:[%s309 + $0x20] sm:$0xf]
        %v347 = vld [vmem:[%s309 + $0x24] sm:$0xf]
        %v348 = vld [vmem:[%s309 + $0x28] sm:$0xf]
        %v349 = vld [vmem:[%s309 + $0x2c] sm:$0xf]
        %v350 = vld [vmem:[%s309 + $0x30] sm:$0xf]
        %v351 = vld [vmem:[%s309 + $0x34] sm:$0xf]
        %v352 = vld [vmem:[%s309 + $0x38] sm:$0xf]
        %v353 = vld [vmem:[%s309 + $0x3c] sm:$0xf]
        %v354 = vld [vmem:[%s309] sm:$0xe]
        %v355 = vld [vmem:[%s325] sm:$0x1]
        %v372 = vunpack.c.l.b16 %v354
        %v373 = vunpack.c.l.b16 %v339
        %v374 = vunpack.c.l.b16 %v340
        %v375 = vunpack.c.l.b16 %v341
        %v376 = vunpack.c.l.b16 %v342
        %v377 = vunpack.c.l.b16 %v343
        %v378 = vunpack.c.l.b16 %v344
        %v379 = vunpack.c.l.b16 %v345
        %v380 = vunpack.c.l.b16 %v346
        %v381 = vunpack.c.l.b16 %v347
        %v382 = vunpack.c.l.b16 %v348
        %v383 = vunpack.c.l.b16 %v349
        %v384 = vunpack.c.l.b16 %v350
        %v385 = vunpack.c.l.b16 %v351
        %v386 = vunpack.c.l.b16 %v352
        %v387 = vunpack.c.l.b16 %v353
        %v388 = vpack.c.b16 %v373, %v372
        %v389 = vpack.c.b16 %v375, %v374
        %v390 = vpack.c.b16 %v377, %v376
        %v391 = vpack.c.b16 %v379, %v378
        %v392 = vpack.c.b16 %v381, %v380
        %v393 = vpack.c.b16 %v383, %v382
        %v394 = vpack.c.b16 %v385, %v384
        %v395 = vpack.c.b16 %v387, %v386
        %vm396 = vcmask 1046528
        %v397 = vrot.slane %v388, 1
        %v398 = vrot.slane %v389, 1
        %v399 = vsel %vm396, %v397, %v398
        %v400 = vrot.slane %v390, 1
        %v401 = vsel %vm396, %v398, %v400
        %v402 = vrot.slane %v391, 1
        %v403 = vsel %vm396, %v400, %v402
        %v404 = vrot.slane %v392, 1
        %v405 = vsel %vm396, %v402, %v404
        %v406 = vrot.slane %v393, 1
        %v407 = vsel %vm396, %v404, %v406
        %v408 = vrot.slane %v394, 1
        %v409 = vsel %vm396, %v406, %v408
        %v410 = vrot.slane %v395, 1
        %v411 = vsel %vm396, %v408, %v410
        %v413 = vunpack.c.l.b16 %v355
        %v414 = vpack.c.b16 %v413, %v413
        %v415 = vrot.slane %v414, 1
        %vm416 = vcmask 1046528
        %v419 = vsel %vm416, %v410, %v415
        %v420 = vld [vmem:[%s309] sm:$0xc]
        %v421 = vld [vmem:[%s325] sm:$0x3]
        %v423 = vunpack.c.l.b16 %v420
        %v424 = vpack.c.b16 %v373, %v423
        %vm425 = vcmask 1045504
        %v426 = vrot.slane %v424, 2
        %v427 = vrot.slane %v389, 2
        %v428 = vsel %vm425, %v426, %v427
        %v429 = vrot.slane %v390, 2
        %v430 = vsel %vm425, %v427, %v429
        %v431 = vrot.slane %v391, 2
        %v432 = vsel %vm425, %v429, %v431
        %v433 = vrot.slane %v392, 2
        %v434 = vsel %vm425, %v431, %v433
        %v435 = vrot.slane %v393, 2
        %v436 = vsel %vm425, %v433, %v435
        %v437 = vrot.slane %v394, 2
        %v438 = vsel %vm425, %v435, %v437
        %v439 = vrot.slane %v395, 2
        %v440 = vsel %vm425, %v437, %v439
        %v442 = vunpack.c.l.b16 %v421
        %v443 = vpack.c.b16 %v442, %v442
        %v444 = vrot.slane %v443, 2
        %vm445 = vcmask 1045504
        %v448 = vsel %vm445, %v439, %v444
        %v449 = vld [vmem:[%s332] sm:$0x3]
        %s450 = scalar_lea.vmem %s332, 2
        %v451 = vld [vmem:[%s450] sm:$0x3]
        %vm452 = vcmask 31744
        %v454 = vsel %vm452, %v399, 0
        %v457 = vsel %vm452, %v401, 0
        %v460 = vsel %vm452, %v403, 0
        %v463 = vsel %vm452, %v405, 0
        %v466 = vsel %vm452, %v407, 0
        %v469 = vsel %vm452, %v409, 0
        %v472 = vsel %vm452, %v411, 0
        %v474 = vsel %vm452, %v419, 0
        %vm476 = vcmask 1041408
        %v478 = vsel %vm476, %v451, 0
        %480 = vmatprep.subr.bf16.mxu0 0
        %481 = vmatpush1.bf16.msra.mxu0 0
        %482 = vmatprep.subr.bf16.mxu0 0
        %483 = vmatpush1.bf16.msra.mxu0 0
        %484 = vmatprep.subr.bf16.mxu0 0
        %485 = vmatpush1.bf16.msra.mxu0 0
        %486 = vmatprep.subr.bf16.mxu0 0
        %487 = vmatpush1.bf16.msra.mxu0 0
        %488 = vmatprep.subr.bf16.mxu0 0
        %489 = vmatpush1.bf16.msra.mxu0 0
        %490 = vmatprep.subr.bf16.mxu0 0
        %491 = vmatpush1.bf16.msra.mxu0 0
        %492 = vmatprep.subr.bf16.mxu0 0
        %493 = vmatpush1.bf16.msra.mxu0 0
        %494 = vmatprep.subr.bf16.mxu0 0
        %495 = vmatpush1.bf16.msra.mxu0 %v478
        %496 = vmatprep.subr.bf16.mxu0 0
        %497 = vmatpush2.bf16.msra.mxu0 0
        %498 = vmatprep.subr.bf16.mxu0 0
        %499 = vmatpush2.bf16.msra.mxu0 0
        %500 = vmatprep.subr.bf16.mxu0 0
        %501 = vmatpush2.bf16.msra.mxu0 0
        %502 = vmatprep.subr.bf16.mxu0 0
        %503 = vmatpush2.bf16.msra.mxu0 0
        %504 = vmatprep.subr.bf16.mxu0 0
        %505 = vmatpush2.bf16.msra.mxu0 0
        %506 = vmatprep.subr.bf16.mxu0 0
        %507 = vmatpush2.bf16.msra.mxu0 0
        %508 = vmatprep.subr.bf16.mxu0 0
        %509 = vmatpush2.bf16.msra.mxu0 0
        %510 = vmatprep.subr.bf16.mxu0 0
        %511 = vmatpush2.bf16.msra.mxu0 0
        %512 = vmatprep.mubr.bf16.mxu0 0
        %513 = vmatmul.mubr.bf16.gmra.mxu0 %v454
        %v514 = vpop.f32.mrf.mxu0
        %v515 = vadd.f32 0.0, %v514
        %v516 = vpop.f32.mrf.mxu0
        %v517 = vpop.f32.mrf.mxu0
        %v518 = vadd.f32 0.0, %v517
        %v519 = vpop.f32.mrf.mxu0
        %520 = vmatprep.mubr.bf16.mxu0 0
        %521 = vmatmul.mubr.bf16.gmra.mxu0 %v457
        %v522 = vpop.f32.mrf.mxu0
        %v523 = vadd.f32 0.0, %v522
        %v524 = vpop.f32.mrf.mxu0
        %v525 = vpop.f32.mrf.mxu0
        %v526 = vadd.f32 0.0, %v525
        %v527 = vpop.f32.mrf.mxu0
        %528 = vmatprep.mubr.bf16.mxu0 0
        %529 = vmatmul.mubr.bf16.gmra.mxu0 %v460
        %v530 = vpop.f32.mrf.mxu0
        %v531 = vadd.f32 0.0, %v530
        %v532 = vpop.f32.mrf.mxu0
        %v533 = vpop.f32.mrf.mxu0
        %v534 = vadd.f32 0.0, %v533
        %v535 = vpop.f32.mrf.mxu0
        %536 = vmatprep.mubr.bf16.mxu0 0
        %537 = vmatmul.mubr.bf16.gmra.mxu0 %v463
        %v538 = vpop.f32.mrf.mxu0
        %v539 = vadd.f32 0.0, %v538
        %v540 = vpop.f32.mrf.mxu0
        %v541 = vpop.f32.mrf.mxu0
        %v542 = vadd.f32 0.0, %v541
        %v543 = vpop.f32.mrf.mxu0
        %544 = vmatprep.mubr.bf16.mxu0 0
        %545 = vmatmul.mubr.bf16.gmra.mxu0 %v466
        %v546 = vpop.f32.mrf.mxu0
        %v547 = vadd.f32 0.0, %v546
        %v548 = vpop.f32.mrf.mxu0
        %v549 = vpop.f32.mrf.mxu0
        %v550 = vadd.f32 0.0, %v549
        %v551 = vpop.f32.mrf.mxu0
        %552 = vmatprep.mubr.bf16.mxu0 0
        %553 = vmatmul.mubr.bf16.gmra.mxu0 %v469
        %v554 = vpop.f32.mrf.mxu0
        %v555 = vadd.f32 0.0, %v554
        %v556 = vpop.f32.mrf.mxu0
        %v557 = vpop.f32.mrf.mxu0
        %v558 = vadd.f32 0.0, %v557
        %v559 = vpop.f32.mrf.mxu0
        %560 = vmatprep.mubr.bf16.mxu0 0
        %561 = vmatmul.mubr.bf16.gmra.mxu0 %v472
        %v562 = vpop.f32.mrf.mxu0
        %v563 = vadd.f32 0.0, %v562
        %v564 = vpop.f32.mrf.mxu0
        %v565 = vpop.f32.mrf.mxu0
        %v566 = vadd.f32 0.0, %v565
        %v567 = vpop.f32.mrf.mxu0
        %568 = vmatprep.mubr.bf16.mxu0 0
        %569 = vmatmul.mubr.bf16.gmra.mxu0 %v474
        %v570 = vpop.f32.mrf.mxu0
        %v571 = vadd.f32 0.0, %v570
        %v572 = vpop.f32.mrf.mxu0
        %v573 = vpop.f32.mrf.mxu0
        %v574 = vadd.f32 0.0, %v573
        %v575 = vpop.f32.mrf.mxu0
        %576 = vdwg.mxu0
        %v578 = vunpack.c.l.b16 %v338
        %v579 = vpack.c.b16 %v373, %v578
        %v581 = vsel %vm452, %v579, 0
        %v584 = vsel %vm452, %v389, 0
        %v587 = vsel %vm452, %v390, 0
        %v590 = vsel %vm452, %v391, 0
        %v593 = vsel %vm452, %v392, 0
        %v596 = vsel %vm452, %v393, 0
        %v599 = vsel %vm452, %v394, 0
        %v602 = vsel %vm452, %v395, 0
        %v605 = vsel %vm476, %v449, 0
        %607 = vmatprep.subr.bf16.mxu0 0
        %608 = vmatpush1.bf16.msra.mxu0 0
        %609 = vmatprep.subr.bf16.mxu0 0
        %610 = vmatpush1.bf16.msra.mxu0 0
        %611 = vmatprep.subr.bf16.mxu0 0
        %612 = vmatpush1.bf16.msra.mxu0 0
        %613 = vmatprep.subr.bf16.mxu0 0
        %614 = vmatpush1.bf16.msra.mxu0 0
        %615 = vmatprep.subr.bf16.mxu0 0
        %616 = vmatpush1.bf16.msra.mxu0 0
        %617 = vmatprep.subr.bf16.mxu0 0
        %618 = vmatpush1.bf16.msra.mxu0 0
        %619 = vmatprep.subr.bf16.mxu0 0
        %620 = vmatpush1.bf16.msra.mxu0 0
        %621 = vmatprep.subr.bf16.mxu0 0
        %622 = vmatpush1.bf16.msra.mxu0 %v605
        %623 = vmatprep.subr.bf16.mxu0 0
        %624 = vmatpush2.bf16.msra.mxu0 0
        %625 = vmatprep.subr.bf16.mxu0 0
        %626 = vmatpush2.bf16.msra.mxu0 0
        %627 = vmatprep.subr.bf16.mxu0 0
        %628 = vmatpush2.bf16.msra.mxu0 0
        %629 = vmatprep.subr.bf16.mxu0 0
        %630 = vmatpush2.bf16.msra.mxu0 0
        %631 = vmatprep.subr.bf16.mxu0 0
        %632 = vmatpush2.bf16.msra.mxu0 0
        %633 = vmatprep.subr.bf16.mxu0 0
        %634 = vmatpush2.bf16.msra.mxu0 0
        %635 = vmatprep.subr.bf16.mxu0 0
        %636 = vmatpush2.bf16.msra.mxu0 0
        %637 = vmatprep.subr.bf16.mxu0 0
        %638 = vmatpush2.bf16.msra.mxu0 0
        %639 = vmatprep.mubr.bf16.mxu0 0
        %640 = vmatmul.mubr.bf16.gmra.mxu0 %v581
        %v641 = vpop.f32.mrf.mxu0
        %v642 = vadd.f32 %v515, %v641
        %v643 = vpop.f32.mrf.mxu0
        %v644 = vpop.f32.mrf.mxu0
        %v645 = vadd.f32 %v518, %v644
        %v646 = vpop.f32.mrf.mxu0
        %647 = vmatprep.mubr.bf16.mxu0 0
        %648 = vmatmul.mubr.bf16.gmra.mxu0 %v584
        %v649 = vpop.f32.mrf.mxu0
        %v650 = vadd.f32 %v523, %v649
        %v651 = vpop.f32.mrf.mxu0
        %v652 = vpop.f32.mrf.mxu0
        %v653 = vadd.f32 %v526, %v652
        %v654 = vpop.f32.mrf.mxu0
        %655 = vmatprep.mubr.bf16.mxu0 0
        %656 = vmatmul.mubr.bf16.gmra.mxu0 %v587
        %v657 = vpop.f32.mrf.mxu0
        %v658 = vadd.f32 %v531, %v657
        %v659 = vpop.f32.mrf.mxu0
        %v660 = vpop.f32.mrf.mxu0
        %v661 = vadd.f32 %v534, %v660
        %v662 = vpop.f32.mrf.mxu0
        %663 = vmatprep.mubr.bf16.mxu0 0
        %664 = vmatmul.mubr.bf16.gmra.mxu0 %v590
        %v665 = vpop.f32.mrf.mxu0
        %v666 = vadd.f32 %v539, %v665
        %v667 = vpop.f32.mrf.mxu0
        %v668 = vpop.f32.mrf.mxu0
        %v669 = vadd.f32 %v542, %v668
        %v670 = vpop.f32.mrf.mxu0
        %671 = vmatprep.mubr.bf16.mxu0 0
        %672 = vmatmul.mubr.bf16.gmra.mxu0 %v593
        %v673 = vpop.f32.mrf.mxu0
        %v674 = vadd.f32 %v547, %v673
        %v675 = vpop.f32.mrf.mxu0
        %v676 = vpop.f32.mrf.mxu0
        %v677 = vadd.f32 %v550, %v676
        %v678 = vpop.f32.mrf.mxu0
        %679 = vmatprep.mubr.bf16.mxu0 0
        %680 = vmatmul.mubr.bf16.gmra.mxu0 %v596
        %v681 = vpop.f32.mrf.mxu0
        %v682 = vadd.f32 %v555, %v681
        %v683 = vpop.f32.mrf.mxu0
        %v684 = vpop.f32.mrf.mxu0
        %v685 = vadd.f32 %v558, %v684
        %v686 = vpop.f32.mrf.mxu0
        %687 = vmatprep.mubr.bf16.mxu0 0
        %688 = vmatmul.mubr.bf16.gmra.mxu0 %v599
        %v689 = vpop.f32.mrf.mxu0
        %v690 = vadd.f32 %v563, %v689
        %v691 = vpop.f32.mrf.mxu0
        %v692 = vpop.f32.mrf.mxu0
        %v693 = vadd.f32 %v566, %v692
        %v694 = vpop.f32.mrf.mxu0
        %695 = vmatprep.mubr.bf16.mxu0 0
        %696 = vmatmul.mubr.bf16.gmra.mxu0 %v602
        %v697 = vpop.f32.mrf.mxu0
        %v698 = vadd.f32 %v571, %v697
        %v699 = vpop.f32.mrf.mxu0
        %v700 = vpop.f32.mrf.mxu0
        %v701 = vadd.f32 %v574, %v700
        %v702 = vpop.f32.mrf.mxu0
        %703 = vdwg.mxu0
        %s704 = scalar_lea.vmem %s332, 4
        %v705 = vld [vmem:[%s704] sm:$0x3]
        %v707 = vsel %vm452, %v428, 0
        %v710 = vsel %vm452, %v430, 0
        %v713 = vsel %vm452, %v432, 0
        %v716 = vsel %vm452, %v434, 0
        %v719 = vsel %vm452, %v436, 0
        %v722 = vsel %vm452, %v438, 0
        %v725 = vsel %vm452, %v440, 0
        %v727 = vsel %vm452, %v448, 0
        %v730 = vsel %vm476, %v705, 0
        %732 = vmatprep.subr.bf16.mxu0 0
        %733 = vmatpush1.bf16.msra.mxu0 0
        %734 = vmatprep.subr.bf16.mxu0 0
        %735 = vmatpush1.bf16.msra.mxu0 0
        %736 = vmatprep.subr.bf16.mxu0 0
        %737 = vmatpush1.bf16.msra.mxu0 0
        %738 = vmatprep.subr.bf16.mxu0 0
        %739 = vmatpush1.bf16.msra.mxu0 0
        %740 = vmatprep.subr.bf16.mxu0 0
        %741 = vmatpush1.bf16.msra.mxu0 0
        %742 = vmatprep.subr.bf16.mxu0 0
        %743 = vmatpush1.bf16.msra.mxu0 0
        %744 = vmatprep.subr.bf16.mxu0 0
        %745 = vmatpush1.bf16.msra.mxu0 0
        %746 = vmatprep.subr.bf16.mxu0 0
        %747 = vmatpush1.bf16.msra.mxu0 %v730
        %748 = vmatprep.subr.bf16.mxu0 0
        %749 = vmatpush2.bf16.msra.mxu0 0
        %750 = vmatprep.subr.bf16.mxu0 0
        %751 = vmatpush2.bf16.msra.mxu0 0
        %752 = vmatprep.subr.bf16.mxu0 0
        %753 = vmatpush2.bf16.msra.mxu0 0
        %754 = vmatprep.subr.bf16.mxu0 0
        %755 = vmatpush2.bf16.msra.mxu0 0
        %756 = vmatprep.subr.bf16.mxu0 0
        %757 = vmatpush2.bf16.msra.mxu0 0
        %758 = vmatprep.subr.bf16.mxu0 0
        %759 = vmatpush2.bf16.msra.mxu0 0
        %760 = vmatprep.subr.bf16.mxu0 0
        %761 = vmatpush2.bf16.msra.mxu0 0
        %762 = vmatprep.subr.bf16.mxu0 0
        %763 = vmatpush2.bf16.msra.mxu0 0
        %764 = vmatprep.mubr.bf16.mxu0 0
        %765 = vmatmul.mubr.bf16.gmra.mxu0 %v707
        %v766 = vpop.f32.mrf.mxu0
        %v767 = vadd.f32 0.0, %v766
        %v768 = vpop.f32.mrf.mxu0
        %v769 = vpop.f32.mrf.mxu0
        %v770 = vadd.f32 0.0, %v769
        %v771 = vpop.f32.mrf.mxu0
        %772 = vmatprep.mubr.bf16.mxu0 0
        %773 = vmatmul.mubr.bf16.gmra.mxu0 %v710
        %v774 = vpop.f32.mrf.mxu0
        %v775 = vadd.f32 0.0, %v774
        %v776 = vpop.f32.mrf.mxu0
        %v777 = vpop.f32.mrf.mxu0
        %v778 = vadd.f32 0.0, %v777
        %v779 = vpop.f32.mrf.mxu0
        %780 = vmatprep.mubr.bf16.mxu0 0
        %781 = vmatmul.mubr.bf16.gmra.mxu0 %v713
        %v782 = vpop.f32.mrf.mxu0
        %v783 = vadd.f32 0.0, %v782
        %v784 = vpop.f32.mrf.mxu0
        %v785 = vpop.f32.mrf.mxu0
        %v786 = vadd.f32 0.0, %v785
        %v787 = vpop.f32.mrf.mxu0
        %788 = vmatprep.mubr.bf16.mxu0 0
        %789 = vmatmul.mubr.bf16.gmra.mxu0 %v716
        %v790 = vpop.f32.mrf.mxu0
        %v791 = vadd.f32 0.0, %v790
        %v792 = vpop.f32.mrf.mxu0
        %v793 = vpop.f32.mrf.mxu0
        %v794 = vadd.f32 0.0, %v793
        %v795 = vpop.f32.mrf.mxu0
        %796 = vmatprep.mubr.bf16.mxu0 0
        %797 = vmatmul.mubr.bf16.gmra.mxu0 %v719
        %v798 = vpop.f32.mrf.mxu0
        %v799 = vadd.f32 0.0, %v798
        %v800 = vpop.f32.mrf.mxu0
        %v801 = vpop.f32.mrf.mxu0
        %v802 = vadd.f32 0.0, %v801
        %v803 = vpop.f32.mrf.mxu0
        %804 = vmatprep.mubr.bf16.mxu0 0
        %805 = vmatmul.mubr.bf16.gmra.mxu0 %v722
        %v806 = vpop.f32.mrf.mxu0
        %v807 = vadd.f32 0.0, %v806
        %v808 = vpop.f32.mrf.mxu0
        %v809 = vpop.f32.mrf.mxu0
        %v810 = vadd.f32 0.0, %v809
        %v811 = vpop.f32.mrf.mxu0
        %812 = vmatprep.mubr.bf16.mxu0 0
        %813 = vmatmul.mubr.bf16.gmra.mxu0 %v725
        %v814 = vpop.f32.mrf.mxu0
        %v815 = vadd.f32 0.0, %v814
        %v816 = vpop.f32.mrf.mxu0
        %v817 = vpop.f32.mrf.mxu0
        %v818 = vadd.f32 0.0, %v817
        %v819 = vpop.f32.mrf.mxu0
        %820 = vmatprep.mubr.bf16.mxu0 0
        %821 = vmatmul.mubr.bf16.gmra.mxu0 %v727
        %v822 = vpop.f32.mrf.mxu0
        %v823 = vadd.f32 0.0, %v822
        %v824 = vpop.f32.mrf.mxu0
        %v825 = vpop.f32.mrf.mxu0
        %v826 = vadd.f32 0.0, %v825
        %v827 = vpop.f32.mrf.mxu0
        %828 = vdwg.mxu0
        %v829 = vadd.f32 %v642, %v767
        %v830 = vadd.f32 %v645, %v770
        %v831 = vadd.f32 %v650, %v775
        %v832 = vadd.f32 %v653, %v778
        %v833 = vadd.f32 %v658, %v783
        %v834 = vadd.f32 %v661, %v786
        %v835 = vadd.f32 %v666, %v791
        %v836 = vadd.f32 %v669, %v794
        %v837 = vadd.f32 %v674, %v799
        %v838 = vadd.f32 %v677, %v802
        %v839 = vadd.f32 %v682, %v807
        %v840 = vadd.f32 %v685, %v810
        %v841 = vadd.f32 %v690, %v815
        %v842 = vadd.f32 %v693, %v818
        %v843 = vadd.f32 %v698, %v823
        %v844 = vadd.f32 %v701, %v826
        %v845 = vld [vmem:[%s335] sm:$0x1]
        %v847 = vlaneseq
        %v848 = vshrl.u32 %v847, 7
        %v849 = vsub.s32 0, %v848
        %v850 = vrot.slane %v845, %v849
        %v852 = vadd.f32 %v829, %v850
        %v853 = vadd.f32 %v830, %v850
        %v854 = vadd.f32 %v831, %v850
        %v855 = vadd.f32 %v832, %v850
        %v856 = vadd.f32 %v833, %v850
        %v857 = vadd.f32 %v834, %v850
        %v858 = vadd.f32 %v835, %v850
        %v859 = vadd.f32 %v836, %v850
        %v860 = vadd.f32 %v837, %v850
        %v861 = vadd.f32 %v838, %v850
        %v862 = vadd.f32 %v839, %v850
        %v863 = vadd.f32 %v840, %v850
        %v864 = vadd.f32 %v841, %v850
        %v865 = vadd.f32 %v842, %v850
        %v866 = vadd.f32 %v843, %v850
        %v867 = vadd.f32 %v844, %v850
        %868 = vst [vmem:[%s296] sm:$0xff] %v852
        %869 = vst [vmem:[%s296 + $0x8] sm:$0xff] %v853
        %870 = vst [vmem:[%s296 + $0x10] sm:$0xff] %v854
        %871 = vst [vmem:[%s296 + $0x18] sm:$0xff] %v855
        %872 = vst [vmem:[%s296 + $0x20] sm:$0xff] %v856
        %873 = vst [vmem:[%s296 + $0x28] sm:$0xff] %v857
        %874 = vst [vmem:[%s296 + $0x30] sm:$0xff] %v858
        %875 = vst [vmem:[%s296 + $0x38] sm:$0xff] %v859
        %876 = vst [vmem:[%s296 + $0x40] sm:$0xff] %v860
        %877 = vst [vmem:[%s296 + $0x48] sm:$0xff] %v861
        %878 = vst [vmem:[%s296 + $0x50] sm:$0xff] %v862
        %879 = vst [vmem:[%s296 + $0x58] sm:$0xff] %v863
        %880 = vst [vmem:[%s296 + $0x60] sm:$0xff] %v864
        %881 = vst [vmem:[%s296 + $0x68] sm:$0xff] %v865
        %882 = vst [vmem:[%s296 + $0x70] sm:$0xff] %v866
        %883 = vst [vmem:[%s296 + $0x78] sm:$0xff] %v867
        %s884 = sand.u32 %s161, 1
        %s885 = scalar_lea.sflag [#allocation3], %s884
        %s886 = sand.u32 %s161, 1
        %s887 = smul.addr %s886, 128
        %s888 = scalar_lea.vmem [#allocation2], %s887
        // Predicated region
        $region37: #{tpu_custom_call.1} parent=35 // pred_check
          %p889 = pneg %p171
        $region38: #{tpu_custom_call.1} parent=35 // pred_check_branch
          %891 = sbr.rel (%p889) target = $region40
        $region39: #{tpu_custom_call.1} parent=35 // pred_region
          %s892 = smul.u32 16, %s24
          %s894 = ssub.s32 2048, 2048
          %895 = vsyncadd %s885, %s894
          %s896 = sadd.s32 %s25, %s892
          %s897 = smul.addr %s23, 16
          %s898 = sadd.s32 %s896, %s897
          %s899 = smul.addr %s898, 128
          %s900 = scalar_lea.hbm %s4, %s899
          %s901 = sshll.u32 %s888, 4
          %s902 = int_to_ptr.vmem [resolvable:$true] %s901
          %907 = dma.vmem_to_hbm [thread:$0]  %s902, 2048, %s900, %s885, 128, 128, 8
        $region40: #{tpu_custom_call.1} parent=35 // pred_fallthru
          _
      $region36: #{tpu_custom_call.1} parent=5 // pred_fallthru
        _
      %p908 = scmp.le.s32.totalorder 2, %s13
      // Predicated region
      $region41: #{tpu_custom_call.1} parent=5 // pred_check
        %p909 = pneg %p908
      $region42: #{tpu_custom_call.1} parent=5 // pred_check_branch
        %911 = sbr.rel (%p909) target = $region44
      $region43: #{tpu_custom_call.1} parent=5 // pred_region
        %s912 = ssub.s32 %s13, 2
        // Predicated region
        $region45: #{tpu_custom_call.1} parent=43 // pred_check
          %p913 = pneg %p177
        $region46: #{tpu_custom_call.1} parent=43 // pred_check_branch
          %915 = sbr.rel (%p913) target = $region48
        $region47: #{tpu_custom_call.1} parent=43 // pred_region
          %s916 = sand.u32 %s162, 1
          %s917 = scalar_lea.sflag [#allocation3], %s916
          %s918 = sand.u32 %s162, 1
          %s919 = smul.addr %s918, 128
          %s920 = scalar_lea.vmem [#allocation2], %s919
          %921 = dma.done %s917, 2048
        $region48: #{tpu_custom_call.1} parent=43 // pred_fallthru
          _
      $region44: #{tpu_custom_call.1} parent=5 // pred_fallthru
        _
    $region6: #{tpu_custom_call.1} parent=1 // loop_footer
      %s17 = sadd.s32 1, %s13
    $region7: #{tpu_custom_call.1} parent=1 // loop_footer_branch
      %12 = sbr.rel target = $region3
    $region8: #{tpu_custom_call.1} parent=1 // loop_exit
      _
    %922 = vsyncpa [#allocation3], 1
    %s923 = scalar_lea.sflag [#allocation3], 1
    %924 = vsyncpa %s923, 1

</llo_original>
